<compile_context>
chip_gen: v6e
topology: v6e:2x2x1
jax: 0.10.0
libtpu: 0.0.40
codegen_flags: <defaults>
</compile_context>

<pallas_src>
import functools

import jax
import jax.numpy as jnp
from jax.experimental import pallas as pl
from jax.experimental.pallas import tpu as pltpu


EPS = 1e-5  # nn.BatchNorm1d default


def _dense_layer_1d_kernel(x_ref, w_ref, gamma_ref, beta_ref, pos_ref, out_ref,
                           *, seq_len, kernel_size, pad):
    """Single-program kernel; whole (tiny) problem resident in VMEM.

    x_ref:     (C, N*L)   f32   channels on sublanes, flattened (batch, length) on lanes
    w_ref:     (K, G, C)  f32   conv weight, tap-major
    gamma_ref: (C, 1)     f32   BN weight
    beta_ref:  (C, 1)     f32   BN bias
    pos_ref:   (1, N*L)   i32   position-within-sequence of each flattened column
    out_ref:   (G, N*L)   f32   conv output only (channel concat done by caller)
    """
    x = x_ref[...].astype(jnp.float32)                       # (C, NL)
    _, nl = x.shape
    g = w_ref.shape[1]

    # ---- BatchNorm1d (training-mode batch stats over (N, L), biased var),
    #      folded into one per-channel scale/shift, fused with ReLU ----
    mean = jnp.mean(x, axis=1, keepdims=True)                # (C, 1)
    var = jnp.mean((x - mean) ** 2, axis=1, keepdims=True)   # (C, 1) biased
    scale = gamma_ref[...] * jax.lax.rsqrt(var + EPS)        # (C, 1)  rsqrt -> EUP
    shift = beta_ref[...] - mean * scale                     # (C, 1)
    y = jnp.maximum(x * scale + shift, 0.0)                  # (C, NL) mul+add+max only
    # TODO(synk): running_mean / running_var buffer updates (training-mode
    # bookkeeping of nn.BatchNorm1d) are not emitted; forward output unaffected.

    # ---- Conv1d ('same', stride 1, no bias) as MXU matmuls ----
    # Static 0/1 selection matrices do the shift + per-sequence zero padding:
    #   S_k[j, l] = 1  iff  j == l + (k - pad)  and  0 <= pos[l] + (k - pad) < L
    # so (y @ S_k)[c, l] = y[c, l + k - pad] inside the sequence, 0 at the edges.
    src = jax.lax.broadcasted_iota(jnp.int32, (nl, nl), 0)   # source column j
    dst = jax.lax.broadcasted_iota(jnp.int32, (nl, nl), 1)   # output column l
    pos = pos_ref[...]                                       # (1, NL)

    acc = jnp.zeros((g, nl), jnp.float32)
    for k in range(kernel_size):                             # static, small (K taps)
        s = k - pad
        valid = (pos + s >= 0) & (pos + s < seq_len)         # (1, NL) dest validity
        sel = (src == dst + s) & valid                       # (NL, NL)
        s_k = jnp.where(sel, 1.0, 0.0)                       # 0/1 f32 shift matrix
        y_k = jnp.dot(y, s_k, preferred_element_type=jnp.float32)        # (C, NL)
        # Channel contraction on the MXU, N*L as the lane dim.
        acc = acc + jnp.dot(w_ref[k], y_k, preferred_element_type=jnp.float32)
        # (On v7x one could fuse the K taps into a single (G, K*C) @ (K*C, NL)
        #  im2col matmul so tap accumulation stays inside the MXU result buffer.)

    out_ref[...] = acc.astype(out_ref.dtype)                 # single dense store


def dense_layer_1d(x, conv_w, bn_gamma, bn_beta):
    """x: (N, C, L), conv_w: (G, C, K) -> (N, C+G, L) = cat([x, conv(relu(bn(x)))], 1)."""
    n, c, l = x.shape
    g, cw, k = conv_w.shape
    assert cw == c
    assert k % 2 == 1, "PyTorch 'same' length only holds for odd kernel_size here"
    pad = (k - 1) // 2
    nl = n * l

    # Lane-dense kernel layout (done once in the wrapper, pure layout plumbing).
    xt = jnp.transpose(x, (1, 0, 2)).reshape(c, nl).astype(jnp.float32)      # (C, NL)
    w_kgc = jnp.transpose(conv_w, (2, 0, 1)).astype(jnp.float32)             # (K, G, C)
    gamma = bn_gamma.reshape(c, 1).astype(jnp.float32)
    beta = bn_beta.reshape(c, 1).astype(jnp.float32)
    pos = jnp.tile(jnp.arange(l, dtype=jnp.int32), n).reshape(1, nl)         # l mod L

    kernel = functools.partial(_dense_layer_1d_kernel,
                               seq_len=l, kernel_size=k, pad=pad)

    conv_flat = pl.pallas_call(
        kernel,
        out_shape=jax.ShapeDtypeStruct((g, nl), jnp.float32),
        in_specs=[pl.BlockSpec(memory_space=pltpu.MemorySpace.VMEM)] * 5,
        out_specs=pl.BlockSpec(memory_space=pltpu.MemorySpace.VMEM),
    )(xt, w_kgc, gamma, beta, pos)

    # Channel concat + layout restore stay in the wrapper so the passthrough
    # channels of x never travel through the kernel.
    conv_out = jnp.transpose(conv_flat.reshape(g, n, l), (1, 0, 2))          # (N, G, L)
    return jnp.concatenate([x, conv_out], axis=1)                            # (N, C+G, L)


def dense_layer_1d_ref(x, conv_w, bn_gamma, bn_beta):
    """Pure-JAX reference mirroring the PyTorch module (train-mode BN)."""
    n, c, l = x.shape
    g, _, k = conv_w.shape
    pad = (k - 1) // 2
    mean = jnp.mean(x, axis=(0, 2), keepdims=True)
    var = jnp.mean((x - mean) ** 2, axis=(0, 2), keepdims=True)
    y = (x - mean) * jax.lax.rsqrt(var + EPS) * bn_gamma.reshape(1, c, 1) \
        + bn_beta.reshape(1, c, 1)
    y = jnp.maximum(y, 0.0)
    yp = jnp.pad(y, ((0, 0), (0, 0), (pad, pad)))
    out = jnp.zeros((n, g, l), jnp.float32)
    for kk in range(k):
        out = out + jnp.einsum("ncl,gc->ngl", yp[:, :, kk:kk + l], conv_w[:, :, kk])
    return jnp.concatenate([x, out], axis=1)


if __name__ == "__main__":
    # Small shapes consistent with the module: batch=2, in_channels=4,
    # growth_rate=8, length=16, kernel_size=3.
    N, C, G, L, K = 2, 4, 8, 16, 3

    key = jax.random.PRNGKey(0)
    kx, kw = jax.random.split(key)

    x = jax.random.normal(kx, (N, C, L), dtype=jnp.float32)
    conv_w = 0.1 * jax.random.normal(kw, (G, C, K), dtype=jnp.float32)
    # Deterministic, non-trivial BN affine params (exercise the fold path).
    bn_gamma = 1.0 + 0.1 * jnp.arange(C, dtype=jnp.float32)
    bn_beta = 0.05 * jnp.arange(C, dtype=jnp.float32)

    out = jax.block_until_ready(dense_layer_1d(x, conv_w, bn_gamma, bn_beta))
    ref = dense_layer_1d_ref(x, conv_w, bn_gamma, bn_beta)

    assert out.shape == (N, C + G, L)
    assert jnp.allclose(out, ref, atol=1e-5, rtol=1e-5), "mismatch vs reference"

    print("KERNEL_OK")
</pallas_src>

<mosaic_0001>
module attributes {stable_mosaic.version = 11 : i64} {
  func.func @_dense_layer_1d_kernel(%arg0: memref<4x32xf32, #tpu.memory_space<vmem>>, %arg1: memref<3x8x4xf32, #tpu.memory_space<vmem>>, %arg2: memref<4x1xf32, #tpu.memory_space<vmem>>, %arg3: memref<4x1xf32, #tpu.memory_space<vmem>>, %arg4: memref<1x32xi32, #tpu.memory_space<vmem>>, %arg5: memref<8x32xf32, #tpu.memory_space<vmem>>) attributes {dimension_semantics = [], scalar_prefetch = 0 : i64, scratch_operands = 0 : i64, tpu.core_type = #tpu.core_type<tc>} {
    %c0 = arith.constant 0 : index
    %c0_0 = arith.constant 0 : index
    %0 = vector.load %arg0[%c0, %c0_0] : memref<4x32xf32, #tpu.memory_space<vmem>>, vector<4x32xf32>
    %cst = arith.constant dense<0.000000e+00> : vector<4xf32>
    %1 = vector.multi_reduction <add>, %0, %cst [1] : vector<4x32xf32> to vector<4xf32>
    %2 = vector.shape_cast %1 : vector<4xf32> to vector<4x1xf32>
    %cst_1 = arith.constant 3.200000e+01 : f32
    %3 = vector.broadcast %cst_1 : f32 to vector<4x1xf32>
    %4 = arith.divf %2, %3 : vector<4x1xf32>
    %5 = vector.broadcast %4 : vector<4x1xf32> to vector<4x32xf32>
    %6 = arith.subf %0, %5 : vector<4x32xf32>
    %7 = arith.mulf %6, %6 : vector<4x32xf32>
    %cst_2 = arith.constant dense<0.000000e+00> : vector<4xf32>
    %8 = vector.multi_reduction <add>, %7, %cst_2 [1] : vector<4x32xf32> to vector<4xf32>
    %9 = vector.shape_cast %8 : vector<4xf32> to vector<4x1xf32>
    %cst_3 = arith.constant 3.200000e+01 : f32
    %10 = vector.broadcast %cst_3 : f32 to vector<4x1xf32>
    %11 = arith.divf %9, %10 : vector<4x1xf32>
    %c0_4 = arith.constant 0 : index
    %c0_5 = arith.constant 0 : index
    %12 = vector.load %arg2[%c0_4, %c0_5] : memref<4x1xf32, #tpu.memory_space<vmem>>, vector<4x1xf32>
    %cst_6 = arith.constant 9.99999974E-6 : f32
    %13 = vector.broadcast %cst_6 : f32 to vector<4x1xf32>
    %14 = arith.addf %11, %13 : vector<4x1xf32>
    %15 = math.rsqrt %14 : vector<4x1xf32>
    %16 = arith.mulf %12, %15 : vector<4x1xf32>
    %c0_7 = arith.constant 0 : index
    %c0_8 = arith.constant 0 : index
    %17 = vector.load %arg3[%c0_7, %c0_8] : memref<4x1xf32, #tpu.memory_space<vmem>>, vector<4x1xf32>
    %18 = arith.mulf %4, %16 : vector<4x1xf32>
    %19 = arith.subf %17, %18 : vector<4x1xf32>
    %20 = vector.broadcast %16 : vector<4x1xf32> to vector<4x32xf32>
    %21 = arith.mulf %0, %20 : vector<4x32xf32>
    %22 = vector.broadcast %19 : vector<4x1xf32> to vector<4x32xf32>
    %23 = arith.addf %21, %22 : vector<4x32xf32>
    %cst_9 = arith.constant 0.000000e+00 : f32
    %24 = vector.broadcast %cst_9 : f32 to vector<4x32xf32>
    %25 = arith.maximumf %23, %24 : vector<4x32xf32>
    %26 = tpu.iota {dimensions = array<i32: 0>} : vector<32x32xi32>
    %27 = tpu.iota {dimensions = array<i32: 1>} : vector<32x32xi32>
    %c0_10 = arith.constant 0 : index
    %c0_11 = arith.constant 0 : index
    %28 = vector.load %arg4[%c0_10, %c0_11] : memref<1x32xi32, #tpu.memory_space<vmem>>, vector<1x32xi32>
    %cst_12 = arith.constant 0.000000e+00 : f32
    %29 = vector.broadcast %cst_12 : f32 to vector<8x32xf32>
    %c-1_i32 = arith.constant -1 : i32
    %30 = vector.broadcast %c-1_i32 : i32 to vector<1x32xi32>
    %31 = arith.addi %28, %30 : vector<1x32xi32>
    %c0_i32 = arith.constant 0 : i32
    %32 = vector.broadcast %c0_i32 : i32 to vector<1x32xi32>
    %33 = arith.cmpi sge, %31, %32 : vector<1x32xi32>
    %c-1_i32_13 = arith.constant -1 : i32
    %34 = vector.broadcast %c-1_i32_13 : i32 to vector<1x32xi32>
    %35 = arith.addi %28, %34 : vector<1x32xi32>
    %c16_i32 = arith.constant 16 : i32
    %36 = vector.broadcast %c16_i32 : i32 to vector<1x32xi32>
    %37 = arith.cmpi slt, %35, %36 : vector<1x32xi32>
    %38 = arith.andi %33, %37 : vector<1x32xi1>
    %c-1_i32_14 = arith.constant -1 : i32
    %39 = vector.broadcast %c-1_i32_14 : i32 to vector<32x32xi32>
    %40 = arith.addi %27, %39 : vector<32x32xi32>
    %41 = arith.cmpi eq, %26, %40 : vector<32x32xi32>
    %42 = vector.broadcast %38 : vector<1x32xi1> to vector<32x32xi1>
    %43 = arith.andi %41, %42 : vector<32x32xi1>
    %cst_15 = arith.constant 1.000000e+00 : f32
    %cst_16 = arith.constant 0.000000e+00 : f32
    %44 = vector.broadcast %cst_15 : f32 to vector<32x32xf32>
    %45 = vector.broadcast %cst_16 : f32 to vector<32x32xf32>
    %46 = arith.select %43, %44, %45 : vector<32x32xi1>, vector<32x32xf32>
    %cst_17 = arith.constant dense<0.000000e+00> : vector<4x32xf32>
    %47 = tpu.matmul %25, %46, %cst_17 {dimension_numbers = #tpu.dot_dimension_numbers<[1], [0], [0], [1], [0, 0, 1, 1], [], []>} : vector<4x32xf32>, vector<32x32xf32>, vector<4x32xf32> -> vector<4x32xf32>
    %c0_18 = arith.constant 0 : index
    %c0_19 = arith.constant 0 : index
    %c0_20 = arith.constant 0 : index
    %48 = vector.load %arg1[%c0_18, %c0_19, %c0_20] : memref<3x8x4xf32, #tpu.memory_space<vmem>>, vector<1x8x4xf32>
    %49 = vector.shape_cast %48 : vector<1x8x4xf32> to vector<8x4xf32>
    %cst_21 = arith.constant dense<0.000000e+00> : vector<8x32xf32>
    %50 = tpu.matmul %49, %47, %cst_21 {dimension_numbers = #tpu.dot_dimension_numbers<[1], [0], [0], [1], [0, 0, 1, 1], [], []>} : vector<8x4xf32>, vector<4x32xf32>, vector<8x32xf32> -> vector<8x32xf32>
    %51 = arith.addf %29, %50 : vector<8x32xf32>
    %c0_i32_22 = arith.constant 0 : i32
    %52 = vector.broadcast %c0_i32_22 : i32 to vector<1x32xi32>
    %53 = arith.addi %28, %52 : vector<1x32xi32>
    %c0_i32_23 = arith.constant 0 : i32
    %54 = vector.broadcast %c0_i32_23 : i32 to vector<1x32xi32>
    %55 = arith.cmpi sge, %53, %54 : vector<1x32xi32>
    %c0_i32_24 = arith.constant 0 : i32
    %56 = vector.broadcast %c0_i32_24 : i32 to vector<1x32xi32>
    %57 = arith.addi %28, %56 : vector<1x32xi32>
    %c16_i32_25 = arith.constant 16 : i32
    %58 = vector.broadcast %c16_i32_25 : i32 to vector<1x32xi32>
    %59 = arith.cmpi slt, %57, %58 : vector<1x32xi32>
    %60 = arith.andi %55, %59 : vector<1x32xi1>
    %c0_i32_26 = arith.constant 0 : i32
    %61 = vector.broadcast %c0_i32_26 : i32 to vector<32x32xi32>
    %62 = arith.addi %27, %61 : vector<32x32xi32>
    %63 = arith.cmpi eq, %26, %62 : vector<32x32xi32>
    %64 = vector.broadcast %60 : vector<1x32xi1> to vector<32x32xi1>
    %65 = arith.andi %63, %64 : vector<32x32xi1>
    %cst_27 = arith.constant 1.000000e+00 : f32
    %cst_28 = arith.constant 0.000000e+00 : f32
    %66 = vector.broadcast %cst_27 : f32 to vector<32x32xf32>
    %67 = vector.broadcast %cst_28 : f32 to vector<32x32xf32>
    %68 = arith.select %65, %66, %67 : vector<32x32xi1>, vector<32x32xf32>
    %cst_29 = arith.constant dense<0.000000e+00> : vector<4x32xf32>
    %69 = tpu.matmul %25, %68, %cst_29 {dimension_numbers = #tpu.dot_dimension_numbers<[1], [0], [0], [1], [0, 0, 1, 1], [], []>} : vector<4x32xf32>, vector<32x32xf32>, vector<4x32xf32> -> vector<4x32xf32>
    %c1 = arith.constant 1 : index
    %c0_30 = arith.constant 0 : index
    %c0_31 = arith.constant 0 : index
    %70 = vector.load %arg1[%c1, %c0_30, %c0_31] : memref<3x8x4xf32, #tpu.memory_space<vmem>>, vector<1x8x4xf32>
    %71 = vector.shape_cast %70 : vector<1x8x4xf32> to vector<8x4xf32>
    %cst_32 = arith.constant dense<0.000000e+00> : vector<8x32xf32>
    %72 = tpu.matmul %71, %69, %cst_32 {dimension_numbers = #tpu.dot_dimension_numbers<[1], [0], [0], [1], [0, 0, 1, 1], [], []>} : vector<8x4xf32>, vector<4x32xf32>, vector<8x32xf32> -> vector<8x32xf32>
    %73 = arith.addf %51, %72 : vector<8x32xf32>
    %c1_i32 = arith.constant 1 : i32
    %74 = vector.broadcast %c1_i32 : i32 to vector<1x32xi32>
    %75 = arith.addi %28, %74 : vector<1x32xi32>
    %c0_i32_33 = arith.constant 0 : i32
    %76 = vector.broadcast %c0_i32_33 : i32 to vector<1x32xi32>
    %77 = arith.cmpi sge, %75, %76 : vector<1x32xi32>
    %c1_i32_34 = arith.constant 1 : i32
    %78 = vector.broadcast %c1_i32_34 : i32 to vector<1x32xi32>
    %79 = arith.addi %28, %78 : vector<1x32xi32>
    %c16_i32_35 = arith.constant 16 : i32
    %80 = vector.broadcast %c16_i32_35 : i32 to vector<1x32xi32>
    %81 = arith.cmpi slt, %79, %80 : vector<1x32xi32>
    %82 = arith.andi %77, %81 : vector<1x32xi1>
    %c1_i32_36 = arith.constant 1 : i32
    %83 = vector.broadcast %c1_i32_36 : i32 to vector<32x32xi32>
    %84 = arith.addi %27, %83 : vector<32x32xi32>
    %85 = arith.cmpi eq, %26, %84 : vector<32x32xi32>
    %86 = vector.broadcast %82 : vector<1x32xi1> to vector<32x32xi1>
    %87 = arith.andi %85, %86 : vector<32x32xi1>
    %cst_37 = arith.constant 1.000000e+00 : f32
    %cst_38 = arith.constant 0.000000e+00 : f32
    %88 = vector.broadcast %cst_37 : f32 to vector<32x32xf32>
    %89 = vector.broadcast %cst_38 : f32 to vector<32x32xf32>
    %90 = arith.select %87, %88, %89 : vector<32x32xi1>, vector<32x32xf32>
    %cst_39 = arith.constant dense<0.000000e+00> : vector<4x32xf32>
    %91 = tpu.matmul %25, %90, %cst_39 {dimension_numbers = #tpu.dot_dimension_numbers<[1], [0], [0], [1], [0, 0, 1, 1], [], []>} : vector<4x32xf32>, vector<32x32xf32>, vector<4x32xf32> -> vector<4x32xf32>
    %c2 = arith.constant 2 : index
    %c0_40 = arith.constant 0 : index
    %c0_41 = arith.constant 0 : index
    %92 = vector.load %arg1[%c2, %c0_40, %c0_41] : memref<3x8x4xf32, #tpu.memory_space<vmem>>, vector<1x8x4xf32>
    %93 = vector.shape_cast %92 : vector<1x8x4xf32> to vector<8x4xf32>
    %cst_42 = arith.constant dense<0.000000e+00> : vector<8x32xf32>
    %94 = tpu.matmul %93, %91, %cst_42 {dimension_numbers = #tpu.dot_dimension_numbers<[1], [0], [0], [1], [0, 0, 1, 1], [], []>} : vector<8x4xf32>, vector<4x32xf32>, vector<8x32xf32> -> vector<8x32xf32>
    %95 = arith.addf %73, %94 : vector<8x32xf32>
    %c0_43 = arith.constant 0 : index
    %c0_44 = arith.constant 0 : index
    %96 = vector.load %arg5[%c0_43, %c0_44] : memref<8x32xf32, #tpu.memory_space<vmem>>, vector<8x32xf32>
    tpu.vector_store %arg5[%c0_43, %c0_44], %95 {strides = array<i32>} : memref<8x32xf32, #tpu.memory_space<vmem>>, vector<8x32xf32>,
    return
  }
}

</mosaic_0001>

<llo_original>
// kernel: tpu_custom_call.1
$region0: #{tpu_custom_call.1}
  #allocation0 [shape = 'u32[]', space=smem, size = 0x4, offset = 0x4, fixed_abs, tag = 'smem constant byte address 0x4 - core index']
  #allocation1 [shape = 'u32[144,128]{1,0:T(1,128)}', space=vmem, size = 0x12000, scoped, tag = 'internal scratch']
  %s0 = inlined_call_operand.vmem [shape: f32[4,32], index: 0, kind: input, shape index: {}]
  %s1 = inlined_call_operand.vmem [shape: f32[3,8,4], index: 1, kind: input, shape index: {}]
  %s2 = inlined_call_operand.vmem [shape: f32[4,1], index: 2, kind: input, shape index: {}]
  %s3 = inlined_call_operand.vmem [shape: f32[4,1], index: 3, kind: input, shape index: {}]
  %s4 = inlined_call_operand.vmem [shape: s32[1,32], index: 4, kind: input, shape index: {}]
  %s5 = inlined_call_operand.hbm [shape: f32[8,32], index: 5, kind: output, shape index: {}]
  %s6 = sld [smem:[#allocation0]]
  $region30: #{tpu_custom_call.1} parent=0
    _
  %s8 = ssub.s32 1, %s6
  %s9 = scalar_select 0, %s8, %s6
  $region1: #{tpu_custom_call.1} parent=0
    #allocation2 [shape = 'u8[4096]{0}', space=vmem, size = 0x1000, scoped, tag = 'output window, operand 0, single buffered']
    #allocation3 [shape = 's32[1]{0}', space=sflag, size = 0x4, scoped, tag = 'scoped memory for tpu_custom_call.1']
    %10 = vsyncpa [#allocation3], 0
    // Predicated region
    $region2: #{tpu_custom_call.1} parent=1 // pred_check
      _
    $region3: #{tpu_custom_call.1} parent=1 // pred_check_branch
      %12 = sbr.rel (0) target = $region5
    $region4: #{tpu_custom_call.1} parent=1 // pred_region
      _
    $region5: #{tpu_custom_call.1} parent=1 // pred_fallthru
      _
    // Predicated region
    $region6: #{tpu_custom_call.1} parent=1 // pred_check
      _
    $region7: #{tpu_custom_call.1} parent=1 // pred_check_branch
      %14 = sbr.rel (0) target = $region9
    $region8: #{tpu_custom_call.1} parent=1 // pred_region
      _
    $region9: #{tpu_custom_call.1} parent=1 // pred_fallthru
      _
    // Predicated region
    $region10: #{tpu_custom_call.1} parent=1 // pred_check
      _
    $region11: #{tpu_custom_call.1} parent=1 // pred_check_branch
      %16 = sbr.rel (0) target = $region13
    $region12: #{tpu_custom_call.1} parent=1 // pred_region
      _
    $region13: #{tpu_custom_call.1} parent=1 // pred_fallthru
      _
    // Predicated region
    $region14: #{tpu_custom_call.1} parent=1 // pred_check
      _
    $region15: #{tpu_custom_call.1} parent=1 // pred_check_branch
      %18 = sbr.rel (0) target = $region17
    $region16: #{tpu_custom_call.1} parent=1 // pred_region
      _
    $region17: #{tpu_custom_call.1} parent=1 // pred_fallthru
      _
    // Predicated region
    $region18: #{tpu_custom_call.1} parent=1 // pred_check
      _
    $region19: #{tpu_custom_call.1} parent=1 // pred_check_branch
      %20 = sbr.rel (0) target = $region21
    $region20: #{tpu_custom_call.1} parent=1 // pred_region
      _
    $region21: #{tpu_custom_call.1} parent=1 // pred_fallthru
      _
    %v21 = vld [vmem:[%s0] sm:$0xf]
    %vm22 = vcmask 257024
    %v23 = vsel %vm22, %v21, 0.0
    %24 = vadd.xlane.f32.xlu0 %v23
    %v25 = vpop.xlane.xlu0 %24
    %v26 = vrcp.pop 32.0
    %v27 = vmul.f32 %v25, %v26
    %v28 = vsub.f32 %v21, %v27
    %v29 = vmul.f32 %v28, %v28
    %v30 = vsel %vm22, %v29, 0.0
    %31 = vadd.xlane.f32.xlu0 %v30
    %v32 = vpop.xlane.xlu0 %31
    %v33 = vmul.f32 %v32, %v26
    %v34 = vld [vmem:[%s2] sm:$0xf]
    %v35 = vadd.f32 %v33, 1e-05
    %v36 = vrsqrt.pop %v35
    %v37 = vmul.f32 %v34, %v36
    %v38 = vld [vmem:[%s3] sm:$0xf]
    %v39 = vmul.f32 %v27, %v37
    %v40 = vsub.f32 %v38, %v39
    %42 = vset.pattern.permute.xlu0 0
    %43 = vperm.xlu0 %42, %v37
    %v44 = vpop.permute.xlu0 %43
    %v46 = vmul.f32 %v21, %v44
    %48 = vset.pattern.permute.xlu0 0
    %49 = vperm.xlu0 %48, %v40
    %v50 = vpop.permute.xlu0 %49
    %v52 = vadd.f32 %v46, %v50
    %v53 = vmax.f32 %v52, 0.0
    %v54 = vlaneseq
    %v55 = vshrl.u32 %v54, 7
    %v56 = vadd.s32 %v55, 8
    %v57 = vadd.s32 %v55, 16
    %v58 = vadd.s32 %v55, 24
    %v59 = vlaneseq
    %v60 = vand.u32 %v59, 127
    %v61 = vld [vmem:[%s4] sm:$0x1]
    %v62 = vadd.s32 %v61, 4294967295
    %vm63 = vcmp.ge.s32.totalorder %v62, 0
    %vm64 = vcmp.lt.s32.totalorder %v62, 16
    %vm65 = vmand %vm63, %vm64
    %v66 = vadd.s32 %v60, 4294967295
    %vm67 = vcmp.eq.s32.totalorder %v55, %v66
    %vm68 = vcmp.eq.s32.totalorder %v56, %v66
    %vm69 = vcmp.eq.s32.totalorder %v57, %v66
    %vm70 = vcmp.eq.s32.totalorder %v58, %v66
    %v71 = vsel %vm65, 1, 0
    %v72 = vlaneseq
    %v73 = vshrl.u32 %v72, 7
    %v74 = vsub.s32 0, %v73
    %v75 = vrot.slane %v71, %v74
    %vm76 = vcmp.eq.s32.totalorder %v75, 1
    %vm77 = vmand %vm67, %vm76
    %vm78 = vmand %vm68, %vm76
    %vm79 = vmand %vm69, %vm76
    %vm80 = vmand %vm70, %vm76
    %v81 = vsel %vm77, 1.0, 0.0
    %v82 = vsel %vm78, 1.0, 0.0
    %v83 = vsel %vm79, 1.0, 0.0
    %v84 = vsel %vm80, 1.0, 0.0
    %vm85 = vcmask 261120
    %v87 = vsel %vm85, %v53, 0
    %89 = vmatprep.subr.mxu0 0.0
    %90 = vmatpush1.msra.mxu0 0.0
    %91 = vmatprep.subr.mxu0 0.0
    %92 = vmatpush1.msra.mxu0 0.0
    %93 = vmatprep.subr.mxu0 0.0
    %94 = vmatpush1.msra.mxu0 0.0
    %95 = vmatprep.subr.mxu0 0.0
    %96 = vmatpush1.msra.mxu0 0.0
    %97 = vmatprep.subr.mxu0 0.0
    %98 = vmatpush1.msra.mxu0 0.0
    %99 = vmatprep.subr.mxu0 0.0
    %100 = vmatpush1.msra.mxu0 0.0
    %101 = vmatprep.subr.mxu0 0.0
    %102 = vmatpush1.msra.mxu0 0.0
    %103 = vmatprep.subr.mxu0 0.0
    %104 = vmatpush1.msra.mxu0 0.0
    %105 = vmatprep.subr.mxu0 0.0
    %106 = vmatpush1.msra.mxu0 0.0
    %107 = vmatprep.subr.mxu0 0.0
    %108 = vmatpush1.msra.mxu0 0.0
    %109 = vmatprep.subr.mxu0 0.0
    %110 = vmatpush1.msra.mxu0 0.0
    %111 = vmatprep.subr.mxu0 0.0
    %112 = vmatpush1.msra.mxu0 0.0
    %113 = vmatprep.subr.mxu0 0.0
    %114 = vmatpush1.msra.mxu0 %v84
    %115 = vmatprep.subr.mxu0 0.0
    %116 = vmatpush1.msra.mxu0 %v83
    %117 = vmatprep.subr.mxu0 0.0
    %118 = vmatpush1.msra.mxu0 %v82
    %119 = vmatprep.subr.mxu0 0.0
    %120 = vmatpush1.msra.mxu0 %v81
    %121 = vmatprep.subr.mxu0 0.0
    %122 = vmatpush2.msra.mxu0 0.0
    %123 = vmatprep.subr.mxu0 0.0
    %124 = vmatpush2.msra.mxu0 0.0
    %125 = vmatprep.subr.mxu0 0.0
    %126 = vmatpush2.msra.mxu0 0.0
    %127 = vmatprep.subr.mxu0 0.0
    %128 = vmatpush2.msra.mxu0 0.0
    %129 = vmatprep.subr.mxu0 0.0
    %130 = vmatpush2.msra.mxu0 0.0
    %131 = vmatprep.subr.mxu0 0.0
    %132 = vmatpush2.msra.mxu0 0.0
    %133 = vmatprep.subr.mxu0 0.0
    %134 = vmatpush2.msra.mxu0 0.0
    %135 = vmatprep.subr.mxu0 0.0
    %136 = vmatpush2.msra.mxu0 0.0
    %137 = vmatprep.subr.mxu0 0.0
    %138 = vmatpush2.msra.mxu0 0.0
    %139 = vmatprep.subr.mxu0 0.0
    %140 = vmatpush2.msra.mxu0 0.0
    %141 = vmatprep.subr.mxu0 0.0
    %142 = vmatpush2.msra.mxu0 0.0
    %143 = vmatprep.subr.mxu0 0.0
    %144 = vmatpush2.msra.mxu0 0.0
    %145 = vmatprep.subr.mxu0 0.0
    %146 = vmatpush2.msra.mxu0 0.0
    %147 = vmatprep.subr.mxu0 0.0
    %148 = vmatpush2.msra.mxu0 0.0
    %149 = vmatprep.subr.mxu0 0.0
    %150 = vmatpush2.msra.mxu0 0.0
    %151 = vmatprep.subr.mxu0 0.0
    %152 = vmatpush2.msra.mxu0 0.0
    %153 = vmatprep.mubr.f32.mxu0 0.0
    %154 = vmatmul.mubr.f32.gmra.mxu0 %v87
    %v155 = vpop.f32.mrf.mxu0
    %v156 = vadd.f32 0.0, %v155
    %v157 = vpop.f32.mrf.mxu0
    %158 = vdwg.mxu0
    %v159 = vld [vmem:[%s1] sm:$0xff]
    %vm160 = vcmp.ge.s32.totalorder %v61, 0
    %vm161 = vcmp.lt.s32.totalorder %v61, 16
    %vm162 = vmand %vm160, %vm161
    %vm163 = vcmp.eq.s32.totalorder %v55, %v60
    %vm164 = vcmp.eq.s32.totalorder %v56, %v60
    %vm165 = vcmp.eq.s32.totalorder %v57, %v60
    %vm166 = vcmp.eq.s32.totalorder %v58, %v60
    %v167 = vsel %vm162, 1, 0
    %v168 = vlaneseq
    %v169 = vshrl.u32 %v168, 7
    %v170 = vsub.s32 0, %v169
    %v171 = vrot.slane %v167, %v170
    %vm172 = vcmp.eq.s32.totalorder %v171, 1
    %vm173 = vmand %vm163, %vm172
    %vm174 = vmand %vm164, %vm172
    %vm175 = vmand %vm165, %vm172
    %vm176 = vmand %vm166, %vm172
    %v177 = vsel %vm173, 1.0, 0.0
    %v178 = vsel %vm174, 1.0, 0.0
    %v179 = vsel %vm175, 1.0, 0.0
    %v180 = vsel %vm176, 1.0, 0.0
    %181 = vmatprep.subr.mxu0 0.0
    %182 = vmatpush1.msra.mxu0 0.0
    %183 = vmatprep.subr.mxu0 0.0
    %184 = vmatpush1.msra.mxu0 0.0
    %185 = vmatprep.subr.mxu0 0.0
    %186 = vmatpush1.msra.mxu0 0.0
    %187 = vmatprep.subr.mxu0 0.0
    %188 = vmatpush1.msra.mxu0 0.0
    %189 = vmatprep.subr.mxu0 0.0
    %190 = vmatpush1.msra.mxu0 0.0
    %191 = vmatprep.subr.mxu0 0.0
    %192 = vmatpush1.msra.mxu0 0.0
    %193 = vmatprep.subr.mxu0 0.0
    %194 = vmatpush1.msra.mxu0 0.0
    %195 = vmatprep.subr.mxu0 0.0
    %196 = vmatpush1.msra.mxu0 0.0
    %197 = vmatprep.subr.mxu0 0.0
    %198 = vmatpush1.msra.mxu0 0.0
    %199 = vmatprep.subr.mxu0 0.0
    %200 = vmatpush1.msra.mxu0 0.0
    %201 = vmatprep.subr.mxu0 0.0
    %202 = vmatpush1.msra.mxu0 0.0
    %203 = vmatprep.subr.mxu0 0.0
    %204 = vmatpush1.msra.mxu0 0.0
    %205 = vmatprep.subr.mxu0 0.0
    %206 = vmatpush1.msra.mxu0 %v180
    %207 = vmatprep.subr.mxu0 0.0
    %208 = vmatpush1.msra.mxu0 %v179
    %209 = vmatprep.subr.mxu0 0.0
    %210 = vmatpush1.msra.mxu0 %v178
    %211 = vmatprep.subr.mxu0 0.0
    %212 = vmatpush1.msra.mxu0 %v177
    %213 = vmatprep.subr.mxu0 0.0
    %214 = vmatpush2.msra.mxu0 0.0
    %215 = vmatprep.subr.mxu0 0.0
    %216 = vmatpush2.msra.mxu0 0.0
    %217 = vmatprep.subr.mxu0 0.0
    %218 = vmatpush2.msra.mxu0 0.0
    %219 = vmatprep.subr.mxu0 0.0
    %220 = vmatpush2.msra.mxu0 0.0
    %221 = vmatprep.subr.mxu0 0.0
    %222 = vmatpush2.msra.mxu0 0.0
    %223 = vmatprep.subr.mxu0 0.0
    %224 = vmatpush2.msra.mxu0 0.0
    %225 = vmatprep.subr.mxu0 0.0
    %226 = vmatpush2.msra.mxu0 0.0
    %227 = vmatprep.subr.mxu0 0.0
    %228 = vmatpush2.msra.mxu0 0.0
    %229 = vmatprep.subr.mxu0 0.0
    %230 = vmatpush2.msra.mxu0 0.0
    %231 = vmatprep.subr.mxu0 0.0
    %232 = vmatpush2.msra.mxu0 0.0
    %233 = vmatprep.subr.mxu0 0.0
    %234 = vmatpush2.msra.mxu0 0.0
    %235 = vmatprep.subr.mxu0 0.0
    %236 = vmatpush2.msra.mxu0 0.0
    %237 = vmatprep.subr.mxu0 0.0
    %238 = vmatpush2.msra.mxu0 0.0
    %239 = vmatprep.subr.mxu0 0.0
    %240 = vmatpush2.msra.mxu0 0.0
    %241 = vmatprep.subr.mxu0 0.0
    %242 = vmatpush2.msra.mxu0 0.0
    %243 = vmatprep.subr.mxu0 0.0
    %244 = vmatpush2.msra.mxu0 0.0
    %245 = vmatprep.mubr.f32.mxu0 0.0
    %246 = vmatmul.mubr.f32.gmra.mxu0 %v87
    %v247 = vpop.f32.mrf.mxu0
    %v248 = vadd.f32 0.0, %v247
    %v249 = vpop.f32.mrf.mxu0
    %250 = vdwg.mxu0
    %s251 = scalar_lea.vmem %s1, 8
    %v252 = vld [vmem:[%s251] sm:$0xff]
    %vm253 = vcmask 31744
    %v255 = vsel %vm253, %v252, 0
    %vm257 = vcmask 1043456
    %v259 = vsel %vm257, %v248, 0
    %261 = vmatprep.subr.mxu0 0.0
    %262 = vmatpush1.msra.mxu0 0.0
    %263 = vmatprep.subr.mxu0 0.0
    %264 = vmatpush1.msra.mxu0 0.0
    %265 = vmatprep.subr.mxu0 0.0
    %266 = vmatpush1.msra.mxu0 0.0
    %267 = vmatprep.subr.mxu0 0.0
    %268 = vmatpush1.msra.mxu0 0.0
    %269 = vmatprep.subr.mxu0 0.0
    %270 = vmatpush1.msra.mxu0 0.0
    %271 = vmatprep.subr.mxu0 0.0
    %272 = vmatpush1.msra.mxu0 0.0
    %273 = vmatprep.subr.mxu0 0.0
    %274 = vmatpush1.msra.mxu0 0.0
    %275 = vmatprep.subr.mxu0 0.0
    %276 = vmatpush1.msra.mxu0 0.0
    %277 = vmatprep.subr.mxu0 0.0
    %278 = vmatpush1.msra.mxu0 0.0
    %279 = vmatprep.subr.mxu0 0.0
    %280 = vmatpush1.msra.mxu0 0.0
    %281 = vmatprep.subr.mxu0 0.0
    %282 = vmatpush1.msra.mxu0 0.0
    %283 = vmatprep.subr.mxu0 0.0
    %284 = vmatpush1.msra.mxu0 0.0
    %285 = vmatprep.subr.mxu0 0.0
    %286 = vmatpush1.msra.mxu0 0.0
    %287 = vmatprep.subr.mxu0 0.0
    %288 = vmatpush1.msra.mxu0 0.0
    %289 = vmatprep.subr.mxu0 0.0
    %290 = vmatpush1.msra.mxu0 0.0
    %291 = vmatprep.subr.mxu0 0.0
    %292 = vmatpush1.msra.mxu0 %v259
    %293 = vmatprep.subr.mxu0 0.0
    %294 = vmatpush2.msra.mxu0 0.0
    %295 = vmatprep.subr.mxu0 0.0
    %296 = vmatpush2.msra.mxu0 0.0
    %297 = vmatprep.subr.mxu0 0.0
    %298 = vmatpush2.msra.mxu0 0.0
    %299 = vmatprep.subr.mxu0 0.0
    %300 = vmatpush2.msra.mxu0 0.0
    %301 = vmatprep.subr.mxu0 0.0
    %302 = vmatpush2.msra.mxu0 0.0
    %303 = vmatprep.subr.mxu0 0.0
    %304 = vmatpush2.msra.mxu0 0.0
    %305 = vmatprep.subr.mxu0 0.0
    %306 = vmatpush2.msra.mxu0 0.0
    %307 = vmatprep.subr.mxu0 0.0
    %308 = vmatpush2.msra.mxu0 0.0
    %309 = vmatprep.subr.mxu0 0.0
    %310 = vmatpush2.msra.mxu0 0.0
    %311 = vmatprep.subr.mxu0 0.0
    %312 = vmatpush2.msra.mxu0 0.0
    %313 = vmatprep.subr.mxu0 0.0
    %314 = vmatpush2.msra.mxu0 0.0
    %315 = vmatprep.subr.mxu0 0.0
    %316 = vmatpush2.msra.mxu0 0.0
    %317 = vmatprep.subr.mxu0 0.0
    %318 = vmatpush2.msra.mxu0 0.0
    %319 = vmatprep.subr.mxu0 0.0
    %320 = vmatpush2.msra.mxu0 0.0
    %321 = vmatprep.subr.mxu0 0.0
    %322 = vmatpush2.msra.mxu0 0.0
    %323 = vmatprep.subr.mxu0 0.0
    %324 = vmatpush2.msra.mxu0 0.0
    %325 = vmatprep.mubr.f32.mxu0 0.0
    %326 = vmatmul.mubr.f32.gmra.mxu0 %v255
    %v327 = vpop.f32.mrf.mxu0
    %v328 = vadd.f32 0.0, %v327
    %v329 = vpop.f32.mrf.mxu0
    %330 = vdwg.mxu0
    %v332 = vsel %vm253, %v159, 0
    %v335 = vsel %vm257, %v156, 0
    %337 = vmatprep.subr.mxu0 0.0
    %338 = vmatpush1.msra.mxu0 0.0
    %339 = vmatprep.subr.mxu0 0.0
    %340 = vmatpush1.msra.mxu0 0.0
    %341 = vmatprep.subr.mxu0 0.0
    %342 = vmatpush1.msra.mxu0 0.0
    %343 = vmatprep.subr.mxu0 0.0
    %344 = vmatpush1.msra.mxu0 0.0
    %345 = vmatprep.subr.mxu0 0.0
    %346 = vmatpush1.msra.mxu0 0.0
    %347 = vmatprep.subr.mxu0 0.0
    %348 = vmatpush1.msra.mxu0 0.0
    %349 = vmatprep.subr.mxu0 0.0
    %350 = vmatpush1.msra.mxu0 0.0
    %351 = vmatprep.subr.mxu0 0.0
    %352 = vmatpush1.msra.mxu0 0.0
    %353 = vmatprep.subr.mxu0 0.0
    %354 = vmatpush1.msra.mxu0 0.0
    %355 = vmatprep.subr.mxu0 0.0
    %356 = vmatpush1.msra.mxu0 0.0
    %357 = vmatprep.subr.mxu0 0.0
    %358 = vmatpush1.msra.mxu0 0.0
    %359 = vmatprep.subr.mxu0 0.0
    %360 = vmatpush1.msra.mxu0 0.0
    %361 = vmatprep.subr.mxu0 0.0
    %362 = vmatpush1.msra.mxu0 0.0
    %363 = vmatprep.subr.mxu0 0.0
    %364 = vmatpush1.msra.mxu0 0.0
    %365 = vmatprep.subr.mxu0 0.0
    %366 = vmatpush1.msra.mxu0 0.0
    %367 = vmatprep.subr.mxu0 0.0
    %368 = vmatpush1.msra.mxu0 %v335
    %369 = vmatprep.subr.mxu0 0.0
    %370 = vmatpush2.msra.mxu0 0.0
    %371 = vmatprep.subr.mxu0 0.0
    %372 = vmatpush2.msra.mxu0 0.0
    %373 = vmatprep.subr.mxu0 0.0
    %374 = vmatpush2.msra.mxu0 0.0
    %375 = vmatprep.subr.mxu0 0.0
    %376 = vmatpush2.msra.mxu0 0.0
    %377 = vmatprep.subr.mxu0 0.0
    %378 = vmatpush2.msra.mxu0 0.0
    %379 = vmatprep.subr.mxu0 0.0
    %380 = vmatpush2.msra.mxu0 0.0
    %381 = vmatprep.subr.mxu0 0.0
    %382 = vmatpush2.msra.mxu0 0.0
    %383 = vmatprep.subr.mxu0 0.0
    %384 = vmatpush2.msra.mxu0 0.0
    %385 = vmatprep.subr.mxu0 0.0
    %386 = vmatpush2.msra.mxu0 0.0
    %387 = vmatprep.subr.mxu0 0.0
    %388 = vmatpush2.msra.mxu0 0.0
    %389 = vmatprep.subr.mxu0 0.0
    %390 = vmatpush2.msra.mxu0 0.0
    %391 = vmatprep.subr.mxu0 0.0
    %392 = vmatpush2.msra.mxu0 0.0
    %393 = vmatprep.subr.mxu0 0.0
    %394 = vmatpush2.msra.mxu0 0.0
    %395 = vmatprep.subr.mxu0 0.0
    %396 = vmatpush2.msra.mxu0 0.0
    %397 = vmatprep.subr.mxu0 0.0
    %398 = vmatpush2.msra.mxu0 0.0
    %399 = vmatprep.subr.mxu0 0.0
    %400 = vmatpush2.msra.mxu0 0.0
    %401 = vmatprep.mubr.f32.mxu0 0.0
    %402 = vmatmul.mubr.f32.gmra.mxu0 %v332
    %v403 = vpop.f32.mrf.mxu0
    %v404 = vadd.f32 %v328, %v403
    %v405 = vpop.f32.mrf.mxu0
    %406 = vdwg.mxu0
    %v407 = vadd.s32 %v61, 1
    %vm408 = vcmp.ge.s32.totalorder %v407, 0
    %vm409 = vcmp.lt.s32.totalorder %v407, 16
    %vm410 = vmand %vm408, %vm409
    %v411 = vadd.s32 %v60, 1
    %vm412 = vcmp.eq.s32.totalorder %v55, %v411
    %vm413 = vcmp.eq.s32.totalorder %v56, %v411
    %vm414 = vcmp.eq.s32.totalorder %v57, %v411
    %vm415 = vcmp.eq.s32.totalorder %v58, %v411
    %v416 = vsel %vm410, 1, 0
    %v417 = vlaneseq
    %v418 = vshrl.u32 %v417, 7
    %v419 = vsub.s32 0, %v418
    %v420 = vrot.slane %v416, %v419
    %vm421 = vcmp.eq.s32.totalorder %v420, 1
    %vm422 = vmand %vm412, %vm421
    %vm423 = vmand %vm413, %vm421
    %vm424 = vmand %vm414, %vm421
    %vm425 = vmand %vm415, %vm421
    %v426 = vsel %vm422, 1.0, 0.0
    %v427 = vsel %vm423, 1.0, 0.0
    %v428 = vsel %vm424, 1.0, 0.0
    %v429 = vsel %vm425, 1.0, 0.0
    %430 = vmatprep.subr.mxu0 0.0
    %431 = vmatpush1.msra.mxu0 0.0
    %432 = vmatprep.subr.mxu0 0.0
    %433 = vmatpush1.msra.mxu0 0.0
    %434 = vmatprep.subr.mxu0 0.0
    %435 = vmatpush1.msra.mxu0 0.0
    %436 = vmatprep.subr.mxu0 0.0
    %437 = vmatpush1.msra.mxu0 0.0
    %438 = vmatprep.subr.mxu0 0.0
    %439 = vmatpush1.msra.mxu0 0.0
    %440 = vmatprep.subr.mxu0 0.0
    %441 = vmatpush1.msra.mxu0 0.0
    %442 = vmatprep.subr.mxu0 0.0
    %443 = vmatpush1.msra.mxu0 0.0
    %444 = vmatprep.subr.mxu0 0.0
    %445 = vmatpush1.msra.mxu0 0.0
    %446 = vmatprep.subr.mxu0 0.0
    %447 = vmatpush1.msra.mxu0 0.0
    %448 = vmatprep.subr.mxu0 0.0
    %449 = vmatpush1.msra.mxu0 0.0
    %450 = vmatprep.subr.mxu0 0.0
    %451 = vmatpush1.msra.mxu0 0.0
    %452 = vmatprep.subr.mxu0 0.0
    %453 = vmatpush1.msra.mxu0 0.0
    %454 = vmatprep.subr.mxu0 0.0
    %455 = vmatpush1.msra.mxu0 %v429
    %456 = vmatprep.subr.mxu0 0.0
    %457 = vmatpush1.msra.mxu0 %v428
    %458 = vmatprep.subr.mxu0 0.0
    %459 = vmatpush1.msra.mxu0 %v427
    %460 = vmatprep.subr.mxu0 0.0
    %461 = vmatpush1.msra.mxu0 %v426
    %462 = vmatprep.subr.mxu0 0.0
    %463 = vmatpush2.msra.mxu0 0.0
    %464 = vmatprep.subr.mxu0 0.0
    %465 = vmatpush2.msra.mxu0 0.0
    %466 = vmatprep.subr.mxu0 0.0
    %467 = vmatpush2.msra.mxu0 0.0
    %468 = vmatprep.subr.mxu0 0.0
    %469 = vmatpush2.msra.mxu0 0.0
    %470 = vmatprep.subr.mxu0 0.0
    %471 = vmatpush2.msra.mxu0 0.0
    %472 = vmatprep.subr.mxu0 0.0
    %473 = vmatpush2.msra.mxu0 0.0
    %474 = vmatprep.subr.mxu0 0.0
    %475 = vmatpush2.msra.mxu0 0.0
    %476 = vmatprep.subr.mxu0 0.0
    %477 = vmatpush2.msra.mxu0 0.0
    %478 = vmatprep.subr.mxu0 0.0
    %479 = vmatpush2.msra.mxu0 0.0
    %480 = vmatprep.subr.mxu0 0.0
    %481 = vmatpush2.msra.mxu0 0.0
    %482 = vmatprep.subr.mxu0 0.0
    %483 = vmatpush2.msra.mxu0 0.0
    %484 = vmatprep.subr.mxu0 0.0
    %485 = vmatpush2.msra.mxu0 0.0
    %486 = vmatprep.subr.mxu0 0.0
    %487 = vmatpush2.msra.mxu0 0.0
    %488 = vmatprep.subr.mxu0 0.0
    %489 = vmatpush2.msra.mxu0 0.0
    %490 = vmatprep.subr.mxu0 0.0
    %491 = vmatpush2.msra.mxu0 0.0
    %492 = vmatprep.subr.mxu0 0.0
    %493 = vmatpush2.msra.mxu0 0.0
    %494 = vmatprep.mubr.f32.mxu0 0.0
    %495 = vmatmul.mubr.f32.gmra.mxu0 %v87
    %v496 = vpop.f32.mrf.mxu0
    %v497 = vadd.f32 0.0, %v496
    %v498 = vpop.f32.mrf.mxu0
    %499 = vdwg.mxu0
    %s500 = scalar_lea.vmem %s1, 16
    %v501 = vld [vmem:[%s500] sm:$0xff]
    %v503 = vsel %vm253, %v501, 0
    %v506 = vsel %vm257, %v497, 0
    %508 = vmatprep.subr.mxu0 0.0
    %509 = vmatpush1.msra.mxu0 0.0
    %510 = vmatprep.subr.mxu0 0.0
    %511 = vmatpush1.msra.mxu0 0.0
    %512 = vmatprep.subr.mxu0 0.0
    %513 = vmatpush1.msra.mxu0 0.0
    %514 = vmatprep.subr.mxu0 0.0
    %515 = vmatpush1.msra.mxu0 0.0
    %516 = vmatprep.subr.mxu0 0.0
    %517 = vmatpush1.msra.mxu0 0.0
    %518 = vmatprep.subr.mxu0 0.0
    %519 = vmatpush1.msra.mxu0 0.0
    %520 = vmatprep.subr.mxu0 0.0
    %521 = vmatpush1.msra.mxu0 0.0
    %522 = vmatprep.subr.mxu0 0.0
    %523 = vmatpush1.msra.mxu0 0.0
    %524 = vmatprep.subr.mxu0 0.0
    %525 = vmatpush1.msra.mxu0 0.0
    %526 = vmatprep.subr.mxu0 0.0
    %527 = vmatpush1.msra.mxu0 0.0
    %528 = vmatprep.subr.mxu0 0.0
    %529 = vmatpush1.msra.mxu0 0.0
    %530 = vmatprep.subr.mxu0 0.0
    %531 = vmatpush1.msra.mxu0 0.0
    %532 = vmatprep.subr.mxu0 0.0
    %533 = vmatpush1.msra.mxu0 0.0
    %534 = vmatprep.subr.mxu0 0.0
    %535 = vmatpush1.msra.mxu0 0.0
    %536 = vmatprep.subr.mxu0 0.0
    %537 = vmatpush1.msra.mxu0 0.0
    %538 = vmatprep.subr.mxu0 0.0
    %539 = vmatpush1.msra.mxu0 %v506
    %540 = vmatprep.subr.mxu0 0.0
    %541 = vmatpush2.msra.mxu0 0.0
    %542 = vmatprep.subr.mxu0 0.0
    %543 = vmatpush2.msra.mxu0 0.0
    %544 = vmatprep.subr.mxu0 0.0
    %545 = vmatpush2.msra.mxu0 0.0
    %546 = vmatprep.subr.mxu0 0.0
    %547 = vmatpush2.msra.mxu0 0.0
    %548 = vmatprep.subr.mxu0 0.0
    %549 = vmatpush2.msra.mxu0 0.0
    %550 = vmatprep.subr.mxu0 0.0
    %551 = vmatpush2.msra.mxu0 0.0
    %552 = vmatprep.subr.mxu0 0.0
    %553 = vmatpush2.msra.mxu0 0.0
    %554 = vmatprep.subr.mxu0 0.0
    %555 = vmatpush2.msra.mxu0 0.0
    %556 = vmatprep.subr.mxu0 0.0
    %557 = vmatpush2.msra.mxu0 0.0
    %558 = vmatprep.subr.mxu0 0.0
    %559 = vmatpush2.msra.mxu0 0.0
    %560 = vmatprep.subr.mxu0 0.0
    %561 = vmatpush2.msra.mxu0 0.0
    %562 = vmatprep.subr.mxu0 0.0
    %563 = vmatpush2.msra.mxu0 0.0
    %564 = vmatprep.subr.mxu0 0.0
    %565 = vmatpush2.msra.mxu0 0.0
    %566 = vmatprep.subr.mxu0 0.0
    %567 = vmatpush2.msra.mxu0 0.0
    %568 = vmatprep.subr.mxu0 0.0
    %569 = vmatpush2.msra.mxu0 0.0
    %570 = vmatprep.subr.mxu0 0.0
    %571 = vmatpush2.msra.mxu0 0.0
    %572 = vmatprep.mubr.f32.mxu0 0.0
    %573 = vmatmul.mubr.f32.gmra.mxu0 %v503
    %v574 = vpop.f32.mrf.mxu0
    %v575 = vadd.f32 0.0, %v574
    %v576 = vpop.f32.mrf.mxu0
    %577 = vdwg.mxu0
    %v578 = vadd.f32 %v404, %v575
    %579 = vst.msk [vmem:[#allocation2] sm:$0xff] %vm85, %v578
    // Predicated region
    $region22: #{tpu_custom_call.1} parent=1 // pred_check
      _
    $region23: #{tpu_custom_call.1} parent=1 // pred_check_branch
      %581 = sbr.rel (0) target = $region25
    $region24: #{tpu_custom_call.1} parent=1 // pred_region
      %s583 = ssub.s32 128, 128
      %584 = vsyncadd [#allocation3], %s583
      %s586 = sshll.u32 [#allocation2], 4
      %s587 = int_to_ptr.vmem [resolvable:$true] %s586
      %589 = dma.vmem_to_hbm [thread:$0]  %s587, 128, %s5, [#allocation3]
    $region25: #{tpu_custom_call.1} parent=1 // pred_fallthru
      _
    // Predicated region
    $region26: #{tpu_custom_call.1} parent=1 // pred_check
      _
    $region27: #{tpu_custom_call.1} parent=1 // pred_check_branch
      %591 = sbr.rel (0) target = $region29
    $region28: #{tpu_custom_call.1} parent=1 // pred_region
      %592 = dma.done [#allocation3], 128
    $region29: #{tpu_custom_call.1} parent=1 // pred_fallthru
      _
    %593 = vsyncpa [#allocation3], 1

</llo_original>
